<compile_context>
chip_gen: v6e
topology: v6e:2x2x1
jax: 0.10.0
libtpu: 0.0.40
codegen_flags: <defaults>
</compile_context>

<pallas_src>
from functools import partial

import numpy as np
import jax
import jax.numpy as jnp
from jax.experimental import pallas as pl
from jax.experimental.pallas import tpu as pltpu


def _mha_kernel(x_ref, wq_ref, wk_ref, wv_ref, bq_ref, bk_ref, bv_ref,
                wo_ref, bo_ref, o_ref, *, num_heads, head_dim):
    Bt, S, D = x_ref.shape
    M = Bt * S
    cdt = x_ref.dtype                 # compute dtype (bf16 in production path)

    # ---- fused QKV projections on the flattened (Bt*S, D) slab: big MXU M ----
    x2 = x_ref[...].reshape(M, D)
    q = (jnp.dot(x2, wq_ref[...], preferred_element_type=jnp.float32)
         + bq_ref[0]).astype(cdt)     # 1/sqrt(head_dim) pre-folded into wq/bq
    k = (jnp.dot(x2, wk_ref[...], preferred_element_type=jnp.float32)
         + bk_ref[0]).astype(cdt)
    v = (jnp.dot(x2, wv_ref[...], preferred_element_type=jnp.float32)
         + bv_ref[0]).astype(cdt)

    # ---- per-(batch, head) softmax attention ----
    # Heads go back into a contiguous head-major (M, D) context slab so the
    # output projection below is ONE full-K matmul.  Scores are materialized
    # one (S, S) f32 head tile at a time.
    # TODO(synk): flash-style KV tiling (online softmax) for S >= ~1024 on v7x.
    ctx_batches = []
    for b in range(Bt):
        r0 = b * S
        q_b, k_b, v_b = q[r0:r0 + S], k[r0:r0 + S], v[r0:r0 + S]
        ctx_heads = []
        for h in range(num_heads):
            c0 = h * head_dim
            qh = q_b[:, c0:c0 + head_dim]                     # (S, hd)
            kh = k_b[:, c0:c0 + head_dim]
            vh = v_b[:, c0:c0 + head_dim]
            # Contract over head_dim of both operands: no explicit kh.T (XLU).
            s = jax.lax.dot_general(qh, kh, (((1,), (1,)), ((), ())),
                                    preferred_element_type=jnp.float32)  # (S,S)
            m = jnp.max(s, axis=-1, keepdims=True)
            p = jnp.exp(s - m)                                # f32 (v5e-safe)
            l = jnp.sum(p, axis=-1, keepdims=True)
            # approx reciprocal runs on the EUP slot; use exact for training.
            probs = (p * pl.reciprocal(l, approx=True)).astype(cdt)
            ctx_heads.append(jnp.dot(probs, vh,
                                     preferred_element_type=jnp.float32))
        ctx_batches.append(jnp.concatenate(ctx_heads, axis=-1))      # (S, D)
    ctx = jnp.concatenate(ctx_batches, axis=0).astype(cdt)           # (M, D)

    # ---- single fused output projection + one wide lane-dense store ----
    out = (jnp.dot(ctx, wo_ref[...], preferred_element_type=jnp.float32)
           + bo_ref[0])
    o_ref[...] = out.reshape(Bt, S, D).astype(o_ref.dtype)


def _pick_batch_tile(B, S, target_rows=256):
    """Largest divisor of B giving >= ~target_rows projection rows per step,
    but preferring a multi-step grid (pipelining + both v7x TCs) when B > 1."""
    bt = max(1, min(B, -(-target_rows // S)))
    while B % bt:
        bt -= 1
    while bt > 1 and B // bt < 2:
        bt -= 1
        while B % bt:
            bt -= 1
    return bt


def efficient_mha(x, wqkv, bqkv, wout, bout, num_heads, *,
                  batch_tile=None, compute_dtype=jnp.bfloat16):
    """Fused MHA forward.

    Weight layout: wqkv is (d_model, 3*d_model), wout is (d_model, d_model),
    i.e. (in_features, out_features).  NOTE: torch.nn.Linear stores weight as
    (out, in) — transpose at integration time or Q/K/V will be silently wrong.
    """
    B, S, D = x.shape
    assert D % num_heads == 0
    hd = D // num_heads
    if batch_tile is None:
        batch_tile = _pick_batch_tile(B, S)
    assert B % batch_tile == 0
    # For best lane/sublane density S should be a multiple of 8 and D a
    # multiple of 128; smaller dims (like this demo) still compile since the
    # blocks cover the full array extents.

    # Un-interleave the fused qkv_linear columns (per-head [q|k|v] chunks of
    # width 3*head_dim) into contiguous head-major Q / K / V slabs and fold the
    # softmax scale into Q.  All done once in f32, weights only.
    scale = 1.0 / (hd ** 0.5)
    w4 = wqkv.astype(jnp.float32).reshape(D, num_heads, 3, hd)
    b3 = bqkv.astype(jnp.float32).reshape(num_heads, 3, hd)
    wq = (w4[:, :, 0, :] * scale).reshape(D, D)
    wk = w4[:, :, 1, :].reshape(D, D)
    wv = w4[:, :, 2, :].reshape(D, D)
    bq = (b3[:, 0, :] * scale).reshape(1, D)
    bk = b3[:, 1, :].reshape(1, D)
    bv = b3[:, 2, :].reshape(1, D)
    bo = bout.reshape(1, D).astype(jnp.float32)

    # bf16 inputs/weights (MXU-native on all generations); f32 accumulation in
    # kernel; biases stay f32 (added to the f32 accumulator).
    xc = x.astype(compute_dtype)
    wq = wq.astype(compute_dtype)
    wk = wk.astype(compute_dtype)
    wv = wv.astype(compute_dtype)
    wo = wout.astype(compute_dtype)

    itm = np.dtype(compute_dtype).itemsize
    out_itm = np.dtype(x.dtype).itemsize
    tile_rows = batch_tile * S
    # Per-step VMEM: double-buffered x/out tiles, weight/bias blocks
    # (conservatively x2), q/k/v/ctx intermediates, one live (S, S) f32 tile.
    step_bytes = (2 * tile_rows * D * itm
                  + 2 * tile_rows * D * out_itm
                  + 2 * 4 * D * D * itm
                  + 2 * 4 * D * 4
                  + 4 * tile_rows * D * 4
                  + S * S * 4)
    vmem_limit = int(min(64 * 1024 * 1024,
                         max(32 * 1024 * 1024, 2 * step_bytes)))

    cost = pl.CostEstimate(
        flops=int(2 * B * S * D * (4 * D + 2 * S)),
        transcendentals=int(B * num_heads * S * S),
        bytes_accessed=int(B * S * D * (itm + out_itm)
                           + 4 * D * D * itm + 4 * D * 4),
    )

    kernel = partial(_mha_kernel, num_heads=num_heads, head_dim=hd)
    full2 = lambda i: (0, 0)
    return pl.pallas_call(
        kernel,
        out_shape=jax.ShapeDtypeStruct((B, S, D), x.dtype),
        grid=(B // batch_tile,),
        in_specs=[
            pl.BlockSpec((batch_tile, S, D), lambda i: (i, 0, 0)),  # x
            pl.BlockSpec((D, D), full2),      # Wq (pre-scaled, bf16)
            pl.BlockSpec((D, D), full2),      # Wk
            pl.BlockSpec((D, D), full2),      # Wv
            pl.BlockSpec((1, D), full2),      # bq (pre-scaled, f32)
            pl.BlockSpec((1, D), full2),      # bk
            pl.BlockSpec((1, D), full2),      # bv
            pl.BlockSpec((D, D), full2),      # Wout
            pl.BlockSpec((1, D), full2),      # bout
        ],
        out_specs=pl.BlockSpec((batch_tile, S, D), lambda i: (i, 0, 0)),
        compiler_params=pltpu.CompilerParams(
            dimension_semantics=("parallel",),
            vmem_limit_bytes=vmem_limit),
        cost_estimate=cost,
    )(xc, wq, wk, wv, bq, bk, bv, wo, bo)


def ref_forward(x, wqkv, bqkv, wout, bout, num_heads):
    """Pure-JAX reference mirroring the PyTorch forward exactly (f32)."""
    B, S, D = x.shape
    hd = D // num_heads
    qkv = x @ wqkv + bqkv[0]                       # (B, S, 3D)
    qkv = qkv.reshape(B, S, num_heads, 3 * hd)     # same view as PyTorch
    q, k, v = qkv[..., :hd], qkv[..., hd:2 * hd], qkv[..., 2 * hd:]
    q = q.transpose(0, 2, 1, 3)
    k = k.transpose(0, 2, 1, 3)
    v = v.transpose(0, 2, 1, 3)
    scores = jnp.einsum('bhqd,bhkd->bhqk', q, k) / (hd ** 0.5)
    probs = jax.nn.softmax(scores, axis=-1)
    out = jnp.einsum('bhqk,bhkd->bhqd', probs, v)
    out = out.transpose(0, 2, 1, 3).reshape(B, S, D)
    return out @ wout + bout[0]


if __name__ == "__main__":
    B, S, D, H = 2, 8, 32, 4   # batch, seq_len, d_model, num_heads (head_dim=8)

    key = jax.random.PRNGKey(0)
    kx, kw1, kb1, kw2, kb2 = jax.random.split(key, 5)

    x = jax.random.normal(kx, (B, S, D), dtype=jnp.float32)
    # nn.Linear(d_model, 3*d_model): weights given as (in, out); biases (1, out).
    wqkv = jax.random.normal(kw1, (D, 3 * D), dtype=jnp.float32) * 0.05
    bqkv = jax.random.normal(kb1, (1, 3 * D), dtype=jnp.float32) * 0.05
    # nn.Linear(d_model, d_model)
    wout = jax.random.normal(kw2, (D, D), dtype=jnp.float32) * 0.05
    bout = jax.random.normal(kb2, (1, D), dtype=jnp.float32) * 0.05

    out = efficient_mha(x, wqkv, bqkv, wout, bout, H)
    jax.block_until_ready(out)

    ref = ref_forward(x, wqkv, bqkv, wout, bout, H)
    assert out.shape == (B, S, D)
    # tolerance covers bf16 inputs/weights + the EUP approximate reciprocal
    assert jnp.allclose(out, ref, atol=2e-2, rtol=2e-2), "mismatch vs pure-JAX reference"

    print("KERNEL_OK")
</pallas_src>

<mosaic_0001>
module attributes {stable_mosaic.version = 11 : i64} {
  func.func @_mha_kernel(%arg0: i32, %arg1: memref<1x8x32xbf16, #tpu.memory_space<vmem>>, %arg2: memref<32x32xbf16, #tpu.memory_space<vmem>>, %arg3: memref<32x32xbf16, #tpu.memory_space<vmem>>, %arg4: memref<32x32xbf16, #tpu.memory_space<vmem>>, %arg5: memref<1x32xf32, #tpu.memory_space<vmem>>, %arg6: memref<1x32xf32, #tpu.memory_space<vmem>>, %arg7: memref<1x32xf32, #tpu.memory_space<vmem>>, %arg8: memref<32x32xbf16, #tpu.memory_space<vmem>>, %arg9: memref<1x32xf32, #tpu.memory_space<vmem>>, %arg10: memref<1x8x32xf32, #tpu.memory_space<vmem>>) attributes {dimension_semantics = [#tpu.dimension_semantics<parallel>], iteration_bounds = array<i64: 2>, scalar_prefetch = 0 : i64, scratch_operands = 0 : i64, tpu.core_type = #tpu.core_type<tc>, window_params = [{transform_indices = @transform_0, window_bounds = array<i64: 1, 8, 32>}, {pipeline_mode = #tpu.pipeline_mode<synchronous>, transform_indices = @transform_1, window_bounds = array<i64: 32, 32>}, {pipeline_mode = #tpu.pipeline_mode<synchronous>, transform_indices = @transform_2, window_bounds = array<i64: 32, 32>}, {pipeline_mode = #tpu.pipeline_mode<synchronous>, transform_indices = @transform_3, window_bounds = array<i64: 32, 32>}, {pipeline_mode = #tpu.pipeline_mode<synchronous>, transform_indices = @transform_4, window_bounds = array<i64: 1, 32>}, {pipeline_mode = #tpu.pipeline_mode<synchronous>, transform_indices = @transform_5, window_bounds = array<i64: 1, 32>}, {pipeline_mode = #tpu.pipeline_mode<synchronous>, transform_indices = @transform_6, window_bounds = array<i64: 1, 32>}, {pipeline_mode = #tpu.pipeline_mode<synchronous>, transform_indices = @transform_7, window_bounds = array<i64: 32, 32>}, {pipeline_mode = #tpu.pipeline_mode<synchronous>, transform_indices = @transform_8, window_bounds = array<i64: 1, 32>}, {transform_indices = @transform_9, window_bounds = array<i64: 1, 8, 32>}]} {
    %c0 = arith.constant 0 : index
    %c0_0 = arith.constant 0 : index
    %c0_1 = arith.constant 0 : index
    %0 = vector.load %arg1[%c0, %c0_0, %c0_1] : memref<1x8x32xbf16, #tpu.memory_space<vmem>>, vector<1x8x32xbf16>
    %1 = vector.shape_cast %0 : vector<1x8x32xbf16> to vector<8x32xbf16>
    %c0_2 = arith.constant 0 : index
    %c0_3 = arith.constant 0 : index
    %2 = vector.load %arg2[%c0_2, %c0_3] : memref<32x32xbf16, #tpu.memory_space<vmem>>, vector<32x32xbf16>
    %cst = arith.constant dense<0.000000e+00> : vector<8x32xf32>
    %3 = tpu.matmul %1, %2, %cst {dimension_numbers = #tpu.dot_dimension_numbers<[1], [0], [0], [1], [0, 0, 1, 1], [], []>} : vector<8x32xbf16>, vector<32x32xbf16>, vector<8x32xf32> -> vector<8x32xf32>
    %c0_4 = arith.constant 0 : index
    %c0_5 = arith.constant 0 : index
    %4 = vector.load %arg5[%c0_4, %c0_5] : memref<1x32xf32, #tpu.memory_space<vmem>>, vector<1x32xf32>
    %5 = vector.shape_cast %4 : vector<1x32xf32> to vector<32xf32>
    %6 = vector.shape_cast %5 : vector<32xf32> to vector<1x32xf32>
    %7 = vector.broadcast %6 : vector<1x32xf32> to vector<8x32xf32>
    %8 = arith.addf %3, %7 : vector<8x32xf32>
    %9 = arith.truncf %8 : vector<8x32xf32> to vector<8x32xbf16>
    %c0_6 = arith.constant 0 : index
    %c0_7 = arith.constant 0 : index
    %10 = vector.load %arg3[%c0_6, %c0_7] : memref<32x32xbf16, #tpu.memory_space<vmem>>, vector<32x32xbf16>
    %cst_8 = arith.constant dense<0.000000e+00> : vector<8x32xf32>
    %11 = tpu.matmul %1, %10, %cst_8 {dimension_numbers = #tpu.dot_dimension_numbers<[1], [0], [0], [1], [0, 0, 1, 1], [], []>} : vector<8x32xbf16>, vector<32x32xbf16>, vector<8x32xf32> -> vector<8x32xf32>
    %c0_9 = arith.constant 0 : index
    %c0_10 = arith.constant 0 : index
    %12 = vector.load %arg6[%c0_9, %c0_10] : memref<1x32xf32, #tpu.memory_space<vmem>>, vector<1x32xf32>
    %13 = vector.shape_cast %12 : vector<1x32xf32> to vector<32xf32>
    %14 = vector.shape_cast %13 : vector<32xf32> to vector<1x32xf32>
    %15 = vector.broadcast %14 : vector<1x32xf32> to vector<8x32xf32>
    %16 = arith.addf %11, %15 : vector<8x32xf32>
    %17 = arith.truncf %16 : vector<8x32xf32> to vector<8x32xbf16>
    %c0_11 = arith.constant 0 : index
    %c0_12 = arith.constant 0 : index
    %18 = vector.load %arg4[%c0_11, %c0_12] : memref<32x32xbf16, #tpu.memory_space<vmem>>, vector<32x32xbf16>
    %cst_13 = arith.constant dense<0.000000e+00> : vector<8x32xf32>
    %19 = tpu.matmul %1, %18, %cst_13 {dimension_numbers = #tpu.dot_dimension_numbers<[1], [0], [0], [1], [0, 0, 1, 1], [], []>} : vector<8x32xbf16>, vector<32x32xbf16>, vector<8x32xf32> -> vector<8x32xf32>
    %c0_14 = arith.constant 0 : index
    %c0_15 = arith.constant 0 : index
    %20 = vector.load %arg7[%c0_14, %c0_15] : memref<1x32xf32, #tpu.memory_space<vmem>>, vector<1x32xf32>
    %21 = vector.shape_cast %20 : vector<1x32xf32> to vector<32xf32>
    %22 = vector.shape_cast %21 : vector<32xf32> to vector<1x32xf32>
    %23 = vector.broadcast %22 : vector<1x32xf32> to vector<8x32xf32>
    %24 = arith.addf %19, %23 : vector<8x32xf32>
    %25 = arith.truncf %24 : vector<8x32xf32> to vector<8x32xbf16>
    %26 = vector.extract_strided_slice %9 {offsets = [0, 0], sizes = [8, 8], strides = [1, 1]} : vector<8x32xbf16> to vector<8x8xbf16>
    %27 = vector.extract_strided_slice %17 {offsets = [0, 0], sizes = [8, 8], strides = [1, 1]} : vector<8x32xbf16> to vector<8x8xbf16>
    %28 = vector.extract_strided_slice %25 {offsets = [0, 0], sizes = [8, 8], strides = [1, 1]} : vector<8x32xbf16> to vector<8x8xbf16>
    %cst_16 = arith.constant dense<0.000000e+00> : vector<8x8xf32>
    %29 = tpu.matmul %26, %27, %cst_16 {dimension_numbers = #tpu.dot_dimension_numbers<[1], [1], [0], [0], [0, 0, 1, 0], [], []>} : vector<8x8xbf16>, vector<8x8xbf16>, vector<8x8xf32> -> vector<8x8xf32>
    %cst_17 = arith.constant dense<0xFF800000> : vector<8xf32>
    %30 = vector.multi_reduction <maximumf>, %29, %cst_17 [1] : vector<8x8xf32> to vector<8xf32>
    %31 = vector.shape_cast %30 : vector<8xf32> to vector<8x1xf32>
    %32 = vector.broadcast %31 : vector<8x1xf32> to vector<8x8xf32>
    %33 = arith.subf %29, %32 : vector<8x8xf32>
    %34 = math.exp %33 : vector<8x8xf32>
    %cst_18 = arith.constant dense<0.000000e+00> : vector<8xf32>
    %35 = vector.multi_reduction <add>, %34, %cst_18 [1] : vector<8x8xf32> to vector<8xf32>
    %36 = vector.shape_cast %35 : vector<8xf32> to vector<8x1xf32>
    %37 = tpu.reciprocal %36 {approx = true} : vector<8x1xf32> -> vector<8x1xf32>
    %38 = vector.broadcast %37 : vector<8x1xf32> to vector<8x8xf32>
    %39 = arith.mulf %34, %38 : vector<8x8xf32>
    %40 = arith.truncf %39 : vector<8x8xf32> to vector<8x8xbf16>
    %cst_19 = arith.constant dense<0.000000e+00> : vector<8x8xf32>
    %41 = tpu.matmul %40, %28, %cst_19 {dimension_numbers = #tpu.dot_dimension_numbers<[1], [0], [0], [1], [0, 0, 1, 1], [], []>} : vector<8x8xbf16>, vector<8x8xbf16>, vector<8x8xf32> -> vector<8x8xf32>
    %42 = vector.extract_strided_slice %9 {offsets = [0, 8], sizes = [8, 8], strides = [1, 1]} : vector<8x32xbf16> to vector<8x8xbf16>
    %43 = vector.extract_strided_slice %17 {offsets = [0, 8], sizes = [8, 8], strides = [1, 1]} : vector<8x32xbf16> to vector<8x8xbf16>
    %44 = vector.extract_strided_slice %25 {offsets = [0, 8], sizes = [8, 8], strides = [1, 1]} : vector<8x32xbf16> to vector<8x8xbf16>
    %cst_20 = arith.constant dense<0.000000e+00> : vector<8x8xf32>
    %45 = tpu.matmul %42, %43, %cst_20 {dimension_numbers = #tpu.dot_dimension_numbers<[1], [1], [0], [0], [0, 0, 1, 0], [], []>} : vector<8x8xbf16>, vector<8x8xbf16>, vector<8x8xf32> -> vector<8x8xf32>
    %cst_21 = arith.constant dense<0xFF800000> : vector<8xf32>
    %46 = vector.multi_reduction <maximumf>, %45, %cst_21 [1] : vector<8x8xf32> to vector<8xf32>
    %47 = vector.shape_cast %46 : vector<8xf32> to vector<8x1xf32>
    %48 = vector.broadcast %47 : vector<8x1xf32> to vector<8x8xf32>
    %49 = arith.subf %45, %48 : vector<8x8xf32>
    %50 = math.exp %49 : vector<8x8xf32>
    %cst_22 = arith.constant dense<0.000000e+00> : vector<8xf32>
    %51 = vector.multi_reduction <add>, %50, %cst_22 [1] : vector<8x8xf32> to vector<8xf32>
    %52 = vector.shape_cast %51 : vector<8xf32> to vector<8x1xf32>
    %53 = tpu.reciprocal %52 {approx = true} : vector<8x1xf32> -> vector<8x1xf32>
    %54 = vector.broadcast %53 : vector<8x1xf32> to vector<8x8xf32>
    %55 = arith.mulf %50, %54 : vector<8x8xf32>
    %56 = arith.truncf %55 : vector<8x8xf32> to vector<8x8xbf16>
    %cst_23 = arith.constant dense<0.000000e+00> : vector<8x8xf32>
    %57 = tpu.matmul %56, %44, %cst_23 {dimension_numbers = #tpu.dot_dimension_numbers<[1], [0], [0], [1], [0, 0, 1, 1], [], []>} : vector<8x8xbf16>, vector<8x8xbf16>, vector<8x8xf32> -> vector<8x8xf32>
    %58 = vector.extract_strided_slice %9 {offsets = [0, 16], sizes = [8, 8], strides = [1, 1]} : vector<8x32xbf16> to vector<8x8xbf16>
    %59 = vector.extract_strided_slice %17 {offsets = [0, 16], sizes = [8, 8], strides = [1, 1]} : vector<8x32xbf16> to vector<8x8xbf16>
    %60 = vector.extract_strided_slice %25 {offsets = [0, 16], sizes = [8, 8], strides = [1, 1]} : vector<8x32xbf16> to vector<8x8xbf16>
    %cst_24 = arith.constant dense<0.000000e+00> : vector<8x8xf32>
    %61 = tpu.matmul %58, %59, %cst_24 {dimension_numbers = #tpu.dot_dimension_numbers<[1], [1], [0], [0], [0, 0, 1, 0], [], []>} : vector<8x8xbf16>, vector<8x8xbf16>, vector<8x8xf32> -> vector<8x8xf32>
    %cst_25 = arith.constant dense<0xFF800000> : vector<8xf32>
    %62 = vector.multi_reduction <maximumf>, %61, %cst_25 [1] : vector<8x8xf32> to vector<8xf32>
    %63 = vector.shape_cast %62 : vector<8xf32> to vector<8x1xf32>
    %64 = vector.broadcast %63 : vector<8x1xf32> to vector<8x8xf32>
    %65 = arith.subf %61, %64 : vector<8x8xf32>
    %66 = math.exp %65 : vector<8x8xf32>
    %cst_26 = arith.constant dense<0.000000e+00> : vector<8xf32>
    %67 = vector.multi_reduction <add>, %66, %cst_26 [1] : vector<8x8xf32> to vector<8xf32>
    %68 = vector.shape_cast %67 : vector<8xf32> to vector<8x1xf32>
    %69 = tpu.reciprocal %68 {approx = true} : vector<8x1xf32> -> vector<8x1xf32>
    %70 = vector.broadcast %69 : vector<8x1xf32> to vector<8x8xf32>
    %71 = arith.mulf %66, %70 : vector<8x8xf32>
    %72 = arith.truncf %71 : vector<8x8xf32> to vector<8x8xbf16>
    %cst_27 = arith.constant dense<0.000000e+00> : vector<8x8xf32>
    %73 = tpu.matmul %72, %60, %cst_27 {dimension_numbers = #tpu.dot_dimension_numbers<[1], [0], [0], [1], [0, 0, 1, 1], [], []>} : vector<8x8xbf16>, vector<8x8xbf16>, vector<8x8xf32> -> vector<8x8xf32>
    %74 = vector.extract_strided_slice %9 {offsets = [0, 24], sizes = [8, 8], strides = [1, 1]} : vector<8x32xbf16> to vector<8x8xbf16>
    %75 = vector.extract_strided_slice %17 {offsets = [0, 24], sizes = [8, 8], strides = [1, 1]} : vector<8x32xbf16> to vector<8x8xbf16>
    %76 = vector.extract_strided_slice %25 {offsets = [0, 24], sizes = [8, 8], strides = [1, 1]} : vector<8x32xbf16> to vector<8x8xbf16>
    %cst_28 = arith.constant dense<0.000000e+00> : vector<8x8xf32>
    %77 = tpu.matmul %74, %75, %cst_28 {dimension_numbers = #tpu.dot_dimension_numbers<[1], [1], [0], [0], [0, 0, 1, 0], [], []>} : vector<8x8xbf16>, vector<8x8xbf16>, vector<8x8xf32> -> vector<8x8xf32>
    %cst_29 = arith.constant dense<0xFF800000> : vector<8xf32>
    %78 = vector.multi_reduction <maximumf>, %77, %cst_29 [1] : vector<8x8xf32> to vector<8xf32>
    %79 = vector.shape_cast %78 : vector<8xf32> to vector<8x1xf32>
    %80 = vector.broadcast %79 : vector<8x1xf32> to vector<8x8xf32>
    %81 = arith.subf %77, %80 : vector<8x8xf32>
    %82 = math.exp %81 : vector<8x8xf32>
    %cst_30 = arith.constant dense<0.000000e+00> : vector<8xf32>
    %83 = vector.multi_reduction <add>, %82, %cst_30 [1] : vector<8x8xf32> to vector<8xf32>
    %84 = vector.shape_cast %83 : vector<8xf32> to vector<8x1xf32>
    %85 = tpu.reciprocal %84 {approx = true} : vector<8x1xf32> -> vector<8x1xf32>
    %86 = vector.broadcast %85 : vector<8x1xf32> to vector<8x8xf32>
    %87 = arith.mulf %82, %86 : vector<8x8xf32>
    %88 = arith.truncf %87 : vector<8x8xf32> to vector<8x8xbf16>
    %cst_31 = arith.constant dense<0.000000e+00> : vector<8x8xf32>
    %89 = tpu.matmul %88, %76, %cst_31 {dimension_numbers = #tpu.dot_dimension_numbers<[1], [0], [0], [1], [0, 0, 1, 1], [], []>} : vector<8x8xbf16>, vector<8x8xbf16>, vector<8x8xf32> -> vector<8x8xf32>
    %90 = tpu.concatenate %41, %57, %73, %89 in 1 : vector<8x8xf32>, vector<8x8xf32>, vector<8x8xf32>, vector<8x8xf32> -> vector<8x32xf32>
    %91 = arith.truncf %90 : vector<8x32xf32> to vector<8x32xbf16>
    %c0_32 = arith.constant 0 : index
    %c0_33 = arith.constant 0 : index
    %92 = vector.load %arg8[%c0_32, %c0_33] : memref<32x32xbf16, #tpu.memory_space<vmem>>, vector<32x32xbf16>
    %cst_34 = arith.constant dense<0.000000e+00> : vector<8x32xf32>
    %93 = tpu.matmul %91, %92, %cst_34 {dimension_numbers = #tpu.dot_dimension_numbers<[1], [0], [0], [1], [0, 0, 1, 1], [], []>} : vector<8x32xbf16>, vector<32x32xbf16>, vector<8x32xf32> -> vector<8x32xf32>
    %c0_35 = arith.constant 0 : index
    %c0_36 = arith.constant 0 : index
    %94 = vector.load %arg9[%c0_35, %c0_36] : memref<1x32xf32, #tpu.memory_space<vmem>>, vector<1x32xf32>
    %95 = vector.shape_cast %94 : vector<1x32xf32> to vector<32xf32>
    %96 = vector.shape_cast %95 : vector<32xf32> to vector<1x32xf32>
    %97 = vector.broadcast %96 : vector<1x32xf32> to vector<8x32xf32>
    %98 = arith.addf %93, %97 : vector<8x32xf32>
    %99 = vector.shape_cast %98 : vector<8x32xf32> to vector<1x8x32xf32>
    %c0_37 = arith.constant 0 : index
    %c0_38 = arith.constant 0 : index
    %c0_39 = arith.constant 0 : index
    %100 = vector.load %arg10[%c0_37, %c0_38, %c0_39] : memref<1x8x32xf32, #tpu.memory_space<vmem>>, vector<1x8x32xf32>
    tpu.vector_store %arg10[%c0_37, %c0_38, %c0_39], %99 {strides = array<i32>} : memref<1x8x32xf32, #tpu.memory_space<vmem>>, vector<1x8x32xf32>,
    return
  }
  func.func @transform_0(%arg0: i32) -> (i32, i32, i32) {
    %c0_i32 = arith.constant 0 : i32
    %c0_i32_0 = arith.constant 0 : i32
    %c0_i32_1 = arith.constant 0 : i32
    return %arg0, %c0_i32, %c0_i32_0 : i32, i32, i32
  }
  func.func @transform_1(%arg0: i32) -> (i32, i32) {
    %c0_i32 = arith.constant 0 : i32
    %c0_i32_0 = arith.constant 0 : i32
    %c0_i32_1 = arith.constant 0 : i32
    return %c0_i32, %c0_i32_0 : i32, i32
  }
  func.func @transform_2(%arg0: i32) -> (i32, i32) {
    %c0_i32 = arith.constant 0 : i32
    %c0_i32_0 = arith.constant 0 : i32
    %c0_i32_1 = arith.constant 0 : i32
    return %c0_i32, %c0_i32_0 : i32, i32
  }
  func.func @transform_3(%arg0: i32) -> (i32, i32) {
    %c0_i32 = arith.constant 0 : i32
    %c0_i32_0 = arith.constant 0 : i32
    %c0_i32_1 = arith.constant 0 : i32
    return %c0_i32, %c0_i32_0 : i32, i32
  }
  func.func @transform_4(%arg0: i32) -> (i32, i32) {
    %c0_i32 = arith.constant 0 : i32
    %c0_i32_0 = arith.constant 0 : i32
    %c0_i32_1 = arith.constant 0 : i32
    return %c0_i32, %c0_i32_0 : i32, i32
  }
  func.func @transform_5(%arg0: i32) -> (i32, i32) {
    %c0_i32 = arith.constant 0 : i32
    %c0_i32_0 = arith.constant 0 : i32
    %c0_i32_1 = arith.constant 0 : i32
    return %c0_i32, %c0_i32_0 : i32, i32
  }
  func.func @transform_6(%arg0: i32) -> (i32, i32) {
    %c0_i32 = arith.constant 0 : i32
    %c0_i32_0 = arith.constant 0 : i32
    %c0_i32_1 = arith.constant 0 : i32
    return %c0_i32, %c0_i32_0 : i32, i32
  }
  func.func @transform_7(%arg0: i32) -> (i32, i32) {
    %c0_i32 = arith.constant 0 : i32
    %c0_i32_0 = arith.constant 0 : i32
    %c0_i32_1 = arith.constant 0 : i32
    return %c0_i32, %c0_i32_0 : i32, i32
  }
  func.func @transform_8(%arg0: i32) -> (i32, i32) {
    %c0_i32 = arith.constant 0 : i32
    %c0_i32_0 = arith.constant 0 : i32
    %c0_i32_1 = arith.constant 0 : i32
    return %c0_i32, %c0_i32_0 : i32, i32
  }
  func.func @transform_9(%arg0: i32) -> (i32, i32, i32) {
    %c0_i32 = arith.constant 0 : i32
    %c0_i32_0 = arith.constant 0 : i32
    %c0_i32_1 = arith.constant 0 : i32
    return %arg0, %c0_i32, %c0_i32_0 : i32, i32, i32
  }
}

</mosaic_0001>

<llo_original>
// kernel: tpu_custom_call.1
$region0: #{tpu_custom_call.1}
  #allocation0 [shape = 'u32[]', space=smem, size = 0x4, offset = 0x4, fixed_abs, tag = 'smem constant byte address 0x4 - core index']
  #allocation1 [shape = 'u32[144,128]{1,0:T(1,128)}', space=vmem, size = 0x12000, scoped, tag = 'internal scratch']
  %s0 = inlined_call_operand.hbm [shape: bf16[2,8,32], index: 0, kind: input, shape index: {}]
  %s1 = inlined_call_operand.hbm [shape: bf16[32,32], index: 1, kind: input, shape index: {}]
  %s2 = inlined_call_operand.hbm [shape: bf16[32,32], index: 2, kind: input, shape index: {}]
  %s3 = inlined_call_operand.hbm [shape: bf16[32,32], index: 3, kind: input, shape index: {}]
  %s4 = inlined_call_operand.vmem [shape: f32[1,32], index: 4, kind: input, shape index: {}]
  %s5 = inlined_call_operand.vmem [shape: f32[1,32], index: 5, kind: input, shape index: {}]
  %s6 = inlined_call_operand.vmem [shape: f32[1,32], index: 6, kind: input, shape index: {}]
  %s7 = inlined_call_operand.hbm [shape: bf16[32,32], index: 7, kind: input, shape index: {}]
  %s8 = inlined_call_operand.vmem [shape: f32[1,32], index: 8, kind: input, shape index: {}]
  %s9 = inlined_call_operand.hbm [shape: f32[2,8,32], index: 9, kind: output, shape index: {}]
  %s10 = sld [smem:[#allocation0]]
  $region89: #{tpu_custom_call.1} parent=0
    _
  %s12 = ssub.s32 1, %s10
  %s13 = scalar_select 0, %s12, %s10
  $region1: #{tpu_custom_call.1} parent=0
    #allocation2 [shape = 'u8[4096]{0}', space=vmem, size = 0x1000, scoped, tag = 'input window, operand 0']
    #allocation3 [shape = 's32[2]{0}', space=sflag, size = 0x8, scoped, tag = 'scoped memory for tpu_custom_call.1']
    #allocation4 [shape = 's32[2]{0}', space=sflag, size = 0x8, scoped, tag = 'scoped memory for tpu_custom_call.1']
    #allocation5 [shape = 'u8[8192]{0}', space=vmem, size = 0x2000, scoped, tag = 'input window, operand 1, single buffered']
    #allocation6 [shape = 's32[1]{0}', space=sflag, size = 0x4, scoped, tag = 'scoped memory for tpu_custom_call.1']
    #allocation7 [shape = 'u8[8192]{0}', space=vmem, size = 0x2000, scoped, tag = 'input window, operand 2, single buffered']
    #allocation8 [shape = 'u8[8192]{0}', space=vmem, size = 0x2000, scoped, tag = 'input window, operand 3, single buffered']
    #allocation9 [shape = 's32[1]{0}', space=sflag, size = 0x4, scoped, tag = 'scoped memory for tpu_custom_call.1']
    #allocation10 [shape = 'u8[8192]{0}', space=vmem, size = 0x2000, scoped, tag = 'input window, operand 7, single buffered']
    #allocation11 [shape = 'u8[8192]{0}', space=vmem, size = 0x2000, scoped, tag = 'output window, operand 0']
    %14 = vsyncpa [#allocation3], 0
    %s15 = scalar_lea.sflag [#allocation3], 1
    %16 = vsyncpa %s15, 0
    %17 = vsyncpa [#allocation6], 0
    %18 = vsyncpa [#allocation9], 0
    %19 = vsyncpa [#allocation4], 0
    %s20 = scalar_lea.sflag [#allocation4], 1
    %21 = vsyncpa %s20, 0
    loop: start=0, step=1, limit=4
    $region2: #{tpu_custom_call.1} parent=1 // loop_pre_header
      _
    $region3: #{tpu_custom_call.1} parent=1 // loop_header
      %s23 = sphi 0, %s27
      %p24 = scmp.ge.s32.totalorder %s23, 4
      %s33 = sphi 0, %s35
      %s36 = sphi 0, %s33
      %s37 = sphi 0, %s36
      %s53 = sphi 0, %s37
      %s57 = sphi 0, %s57
      %s59 = sphi 0, %s57
      %s60 = sphi 0, %s59
      %s74 = sphi 0, %s60
      %s78 = sphi 0, %s78
      %s80 = sphi 0, %s78
      %s81 = sphi 0, %s80
      %s95 = sphi 0, %s81
      %s99 = sphi 0, %s99
      %s101 = sphi 0, %s99
      %s102 = sphi 0, %s101
      %s116 = sphi 0, %s102
      %s120 = sphi 0, %s120
      %s122 = sphi 0, %s120
      %s123 = sphi 0, %s122
      %s137 = sphi 0, %s123
      %s141 = sphi 0, %s141
      %s143 = sphi 0, %s141
      %s144 = sphi 0, %s143
      %s158 = sphi 0, %s144
      %s162 = sphi 0, %s162
      %s164 = sphi 0, %s162
      %s165 = sphi 0, %s164
      %s179 = sphi 0, %s165
      %s183 = sphi 0, %s183
      %s185 = sphi 0, %s183
      %s186 = sphi 0, %s185
      %s200 = sphi 0, %s186
      %s204 = sphi 0, %s204
      %s206 = sphi 0, %s204
      %s207 = sphi 0, %s206
      %s221 = sphi 0, %s207
      %s227 = sphi 0, %s229
      %s230 = sphi 0, %s227
      %s231 = sphi 0, %s230
      %s247 = sphi 0, %s231
    $region4: #{tpu_custom_call.1} parent=1 // loop_header_branch
      %26 = sbr.rel (%p24) target = $region8
    $region5: #{tpu_custom_call.1} parent=1 // loop_body
      %s28 = ssub.s32 %s23, 1
      %s29 = ssub.s32 %s23, 2
      %s30 = sadd.s32 %s23, 1
      %s31 = ssub.s32 %s23, %s30
      %p32 = scmp.eq.s32.totalorder %s31, 0
      %s34 = sadd.s32 %s33, 1
      %s35 = scalar_select %p32, %s33, %s34
      %p38 = pneg %p32
      %p39 = scmp.eq.s32.totalorder %s23, 1
      %p40 = por %p38, %p39
      %p41 = scmp.ne.s32.totalorder %s33, %s36
      %p42 = scmp.eq.s32.totalorder %s23, 0
      %p43 = por %p41, %p42
      %p44 = scmp.ne.s32.totalorder %s33, %s36
      %p45 = scmp.eq.s32.totalorder %s28, 1
      %p46 = por %p44, %p45
      %p47 = scmp.ne.s32.totalorder %s36, %s37
      %p48 = scmp.eq.s32.totalorder %s28, 0
      %p49 = por %p47, %p48
      %p50 = scmp.ne.s32.totalorder %s36, %s37
      %p51 = scmp.eq.s32.totalorder %s29, 1
      %p52 = por %p50, %p51
      %p54 = scmp.ne.s32.totalorder %s37, %s53
      %p55 = scmp.eq.s32.totalorder %s29, 0
      %p56 = por %p54, %p55
      %s58 = sadd.s32 %s57, 1
      %p61 = scmp.eq.s32.totalorder %s23, 1
      %p62 = scmp.ne.s32.totalorder %s57, %s59
      %p63 = scmp.eq.s32.totalorder %s23, 0
      %p64 = por %p62, %p63
      %p65 = scmp.ne.s32.totalorder %s57, %s59
      %p66 = scmp.eq.s32.totalorder %s28, 1
      %p67 = por %p65, %p66
      %p68 = scmp.ne.s32.totalorder %s59, %s60
      %p69 = scmp.eq.s32.totalorder %s28, 0
      %p70 = por %p68, %p69
      %p71 = scmp.ne.s32.totalorder %s59, %s60
      %p72 = scmp.eq.s32.totalorder %s29, 1
      %p73 = por %p71, %p72
      %p75 = scmp.ne.s32.totalorder %s60, %s74
      %p76 = scmp.eq.s32.totalorder %s29, 0
      %p77 = por %p75, %p76
      %s79 = sadd.s32 %s78, 1
      %p82 = scmp.eq.s32.totalorder %s23, 1
      %p83 = scmp.ne.s32.totalorder %s78, %s80
      %p84 = scmp.eq.s32.totalorder %s23, 0
      %p85 = por %p83, %p84
      %p86 = scmp.ne.s32.totalorder %s78, %s80
      %p87 = scmp.eq.s32.totalorder %s28, 1
      %p88 = por %p86, %p87
      %p89 = scmp.ne.s32.totalorder %s80, %s81
      %p90 = scmp.eq.s32.totalorder %s28, 0
      %p91 = por %p89, %p90
      %p92 = scmp.ne.s32.totalorder %s80, %s81
      %p93 = scmp.eq.s32.totalorder %s29, 1
      %p94 = por %p92, %p93
      %p96 = scmp.ne.s32.totalorder %s81, %s95
      %p97 = scmp.eq.s32.totalorder %s29, 0
      %p98 = por %p96, %p97
      %s100 = sadd.s32 %s99, 1
      %p103 = scmp.eq.s32.totalorder %s23, 1
      %p104 = scmp.ne.s32.totalorder %s99, %s101
      %p105 = scmp.eq.s32.totalorder %s23, 0
      %p106 = por %p104, %p105
      %p107 = scmp.ne.s32.totalorder %s99, %s101
      %p108 = scmp.eq.s32.totalorder %s28, 1
      %p109 = por %p107, %p108
      %p110 = scmp.ne.s32.totalorder %s101, %s102
      %p111 = scmp.eq.s32.totalorder %s28, 0
      %p112 = por %p110, %p111
      %p113 = scmp.ne.s32.totalorder %s101, %s102
      %p114 = scmp.eq.s32.totalorder %s29, 1
      %p115 = por %p113, %p114
      %p117 = scmp.ne.s32.totalorder %s102, %s116
      %p118 = scmp.eq.s32.totalorder %s29, 0
      %p119 = por %p117, %p118
      %s121 = sadd.s32 %s120, 1
      %p124 = scmp.eq.s32.totalorder %s23, 1
      %p125 = scmp.ne.s32.totalorder %s120, %s122
      %p126 = scmp.eq.s32.totalorder %s23, 0
      %p127 = por %p125, %p126
      %p128 = scmp.ne.s32.totalorder %s120, %s122
      %p129 = scmp.eq.s32.totalorder %s28, 1
      %p130 = por %p128, %p129
      %p131 = scmp.ne.s32.totalorder %s122, %s123
      %p132 = scmp.eq.s32.totalorder %s28, 0
      %p133 = por %p131, %p132
      %p134 = scmp.ne.s32.totalorder %s122, %s123
      %p135 = scmp.eq.s32.totalorder %s29, 1
      %p136 = por %p134, %p135
      %p138 = scmp.ne.s32.totalorder %s123, %s137
      %p139 = scmp.eq.s32.totalorder %s29, 0
      %p140 = por %p138, %p139
      %s142 = sadd.s32 %s141, 1
      %p145 = scmp.eq.s32.totalorder %s23, 1
      %p146 = scmp.ne.s32.totalorder %s141, %s143
      %p147 = scmp.eq.s32.totalorder %s23, 0
      %p148 = por %p146, %p147
      %p149 = scmp.ne.s32.totalorder %s141, %s143
      %p150 = scmp.eq.s32.totalorder %s28, 1
      %p151 = por %p149, %p150
      %p152 = scmp.ne.s32.totalorder %s143, %s144
      %p153 = scmp.eq.s32.totalorder %s28, 0
      %p154 = por %p152, %p153
      %p155 = scmp.ne.s32.totalorder %s143, %s144
      %p156 = scmp.eq.s32.totalorder %s29, 1
      %p157 = por %p155, %p156
      %p159 = scmp.ne.s32.totalorder %s144, %s158
      %p160 = scmp.eq.s32.totalorder %s29, 0
      %p161 = por %p159, %p160
      %s163 = sadd.s32 %s162, 1
      %p166 = scmp.eq.s32.totalorder %s23, 1
      %p167 = scmp.ne.s32.totalorder %s162, %s164
      %p168 = scmp.eq.s32.totalorder %s23, 0
      %p169 = por %p167, %p168
      %p170 = scmp.ne.s32.totalorder %s162, %s164
      %p171 = scmp.eq.s32.totalorder %s28, 1
      %p172 = por %p170, %p171
      %p173 = scmp.ne.s32.totalorder %s164, %s165
      %p174 = scmp.eq.s32.totalorder %s28, 0
      %p175 = por %p173, %p174
      %p176 = scmp.ne.s32.totalorder %s164, %s165
      %p177 = scmp.eq.s32.totalorder %s29, 1
      %p178 = por %p176, %p177
      %p180 = scmp.ne.s32.totalorder %s165, %s179
      %p181 = scmp.eq.s32.totalorder %s29, 0
      %p182 = por %p180, %p181
      %s184 = sadd.s32 %s183, 1
      %p187 = scmp.eq.s32.totalorder %s23, 1
      %p188 = scmp.ne.s32.totalorder %s183, %s185
      %p189 = scmp.eq.s32.totalorder %s23, 0
      %p190 = por %p188, %p189
      %p191 = scmp.ne.s32.totalorder %s183, %s185
      %p192 = scmp.eq.s32.totalorder %s28, 1
      %p193 = por %p191, %p192
      %p194 = scmp.ne.s32.totalorder %s185, %s186
      %p195 = scmp.eq.s32.totalorder %s28, 0
      %p196 = por %p194, %p195
      %p197 = scmp.ne.s32.totalorder %s185, %s186
      %p198 = scmp.eq.s32.totalorder %s29, 1
      %p199 = por %p197, %p198
      %p201 = scmp.ne.s32.totalorder %s186, %s200
      %p202 = scmp.eq.s32.totalorder %s29, 0
      %p203 = por %p201, %p202
      %s205 = sadd.s32 %s204, 1
      %p208 = scmp.eq.s32.totalorder %s23, 1
      %p209 = scmp.ne.s32.totalorder %s204, %s206
      %p210 = scmp.eq.s32.totalorder %s23, 0
      %p211 = por %p209, %p210
      %p212 = scmp.ne.s32.totalorder %s204, %s206
      %p213 = scmp.eq.s32.totalorder %s28, 1
      %p214 = por %p212, %p213
      %p215 = scmp.ne.s32.totalorder %s206, %s207
      %p216 = scmp.eq.s32.totalorder %s28, 0
      %p217 = por %p215, %p216
      %p218 = scmp.ne.s32.totalorder %s206, %s207
      %p219 = scmp.eq.s32.totalorder %s29, 1
      %p220 = por %p218, %p219
      %p222 = scmp.ne.s32.totalorder %s207, %s221
      %p223 = scmp.eq.s32.totalorder %s29, 0
      %p224 = por %p222, %p223
      %s225 = ssub.s32 %s23, %s30
      %p226 = scmp.eq.s32.totalorder %s225, 0
      %s228 = sadd.s32 %s227, 1
      %s229 = scalar_select %p226, %s227, %s228
      %p232 = pneg %p226
      %p233 = scmp.eq.s32.totalorder %s23, 1
      %p234 = por %p232, %p233
      %p235 = scmp.ne.s32.totalorder %s227, %s230
      %p236 = scmp.eq.s32.totalorder %s23, 0
      %p237 = por %p235, %p236
      %p238 = scmp.ne.s32.totalorder %s227, %s230
      %p239 = scmp.eq.s32.totalorder %s28, 1
      %p240 = por %p238, %p239
      %p241 = scmp.ne.s32.totalorder %s230, %s231
      %p242 = scmp.eq.s32.totalorder %s28, 0
      %p243 = por %p241, %p242
      %p244 = scmp.ne.s32.totalorder %s230, %s231
      %p245 = scmp.eq.s32.totalorder %s29, 1
      %p246 = por %p244, %p245
      %p248 = scmp.ne.s32.totalorder %s231, %s247
      %p249 = scmp.eq.s32.totalorder %s29, 0
      %p250 = por %p248, %p249
      %p251 = scmp.le.s32.totalorder 1, %s23
      %p252 = scmp.lt.s32.totalorder %s23, 3
      %p253 = pnand %p251, %p252
      %p254 = pneg %p253
      // Predicated region
      $region9: #{tpu_custom_call.1} parent=5 // pred_check
        _
      $region10: #{tpu_custom_call.1} parent=5 // pred_check_branch
        %256 = sbr.rel (%p253) target = $region12
      $region11: #{tpu_custom_call.1} parent=5 // pred_region
        %s257 = ssub.s32 %s23, 1
        // Predicated region
        $region13: #{tpu_custom_call.1} parent=11 // pred_check
          %p258 = pneg %p70
        $region14: #{tpu_custom_call.1} parent=11 // pred_check_branch
          %260 = sbr.rel (%p258) target = $region16
        $region15: #{tpu_custom_call.1} parent=11 // pred_region
          %s262 = ssub.s32 256, 256
          %263 = vsyncadd [#allocation6], %s262
          %s264 = sshll.u32 [#allocation5], 4
          %s265 = int_to_ptr.vmem [resolvable:$true] %s264
          %270 = dma.hbm_to_vmem [thread:$0]  %s1, 256, %s265, [#allocation6], 64, 64, 4
        $region16: #{tpu_custom_call.1} parent=11 // pred_fallthru
          _
        // Predicated region
        $region17: #{tpu_custom_call.1} parent=11 // pred_check
          %p271 = pneg %p91
        $region18: #{tpu_custom_call.1} parent=11 // pred_check_branch
          %273 = sbr.rel (%p271) target = $region20
        $region19: #{tpu_custom_call.1} parent=11 // pred_region
          %s275 = ssub.s32 256, 256
          %276 = vsyncadd [#allocation6], %s275
          %s277 = sshll.u32 [#allocation7], 4
          %s278 = int_to_ptr.vmem [resolvable:$true] %s277
          %283 = dma.hbm_to_vmem [thread:$0]  %s2, 256, %s278, [#allocation6], 64, 64, 4
        $region20: #{tpu_custom_call.1} parent=11 // pred_fallthru
          _
        // Predicated region
        $region21: #{tpu_custom_call.1} parent=11 // pred_check
          %p284 = pneg %p112
        $region22: #{tpu_custom_call.1} parent=11 // pred_check_branch
          %286 = sbr.rel (%p284) target = $region24
        $region23: #{tpu_custom_call.1} parent=11 // pred_region
          %s288 = ssub.s32 256, 256
          %289 = vsyncadd [#allocation9], %s288
          %s290 = sshll.u32 [#allocation8], 4
          %s291 = int_to_ptr.vmem [resolvable:$true] %s290
          %296 = dma.hbm_to_vmem [thread:$0]  %s3, 256, %s291, [#allocation9], 64, 64, 4
        $region24: #{tpu_custom_call.1} parent=11 // pred_fallthru
          _
        // Predicated region
        $region25: #{tpu_custom_call.1} parent=11 // pred_check
          %p297 = pneg %p133
        $region26: #{tpu_custom_call.1} parent=11 // pred_check_branch
          %299 = sbr.rel (%p297) target = $region28
        $region27: #{tpu_custom_call.1} parent=11 // pred_region
          _
        $region28: #{tpu_custom_call.1} parent=11 // pred_fallthru
          _
        // Predicated region
        $region29: #{tpu_custom_call.1} parent=11 // pred_check
          %p300 = pneg %p154
        $region30: #{tpu_custom_call.1} parent=11 // pred_check_branch
          %302 = sbr.rel (%p300) target = $region32
        $region31: #{tpu_custom_call.1} parent=11 // pred_region
          _
        $region32: #{tpu_custom_call.1} parent=11 // pred_fallthru
          _
        // Predicated region
        $region33: #{tpu_custom_call.1} parent=11 // pred_check
          %p303 = pneg %p175
        $region34: #{tpu_custom_call.1} parent=11 // pred_check_branch
          %305 = sbr.rel (%p303) target = $region36
        $region35: #{tpu_custom_call.1} parent=11 // pred_region
          _
        $region36: #{tpu_custom_call.1} parent=11 // pred_fallthru
          _
        // Predicated region
        $region37: #{tpu_custom_call.1} parent=11 // pred_check
          %p306 = pneg %p196
        $region38: #{tpu_custom_call.1} parent=11 // pred_check_branch
          %308 = sbr.rel (%p306) target = $region40
        $region39: #{tpu_custom_call.1} parent=11 // pred_region
          %s310 = ssub.s32 256, 256
          %311 = vsyncadd [#allocation9], %s310
          %s312 = sshll.u32 [#allocation10], 4
          %s313 = int_to_ptr.vmem [resolvable:$true] %s312
          %318 = dma.hbm_to_vmem [thread:$0]  %s7, 256, %s313, [#allocation9], 64, 64, 4
        $region40: #{tpu_custom_call.1} parent=11 // pred_fallthru
          _
        // Predicated region
        $region41: #{tpu_custom_call.1} parent=11 // pred_check
          %p319 = pneg %p217
        $region42: #{tpu_custom_call.1} parent=11 // pred_check_branch
          %321 = sbr.rel (%p319) target = $region44
        $region43: #{tpu_custom_call.1} parent=11 // pred_region
          _
        $region44: #{tpu_custom_call.1} parent=11 // pred_fallthru
          _
      $region12: #{tpu_custom_call.1} parent=5 // pred_fallthru
        _
      %p322 = scmp.lt.s32.totalorder %s23, 2
      // Predicated region
      $region45: #{tpu_custom_call.1} parent=5 // pred_check
        %p323 = pneg %p322
      $region46: #{tpu_custom_call.1} parent=5 // pred_check_branch
        %325 = sbr.rel (%p323) target = $region48
      $region47: #{tpu_custom_call.1} parent=5 // pred_region
        // Predicated region
        $region49: #{tpu_custom_call.1} parent=47 // pred_check
          %p326 = pneg %p43
        $region50: #{tpu_custom_call.1} parent=47 // pred_check_branch
          %328 = sbr.rel (%p326) target = $region52
        $region51: #{tpu_custom_call.1} parent=47 // pred_region
          %s329 = sand.u32 %s33, 1
          %s330 = scalar_lea.sflag [#allocation3], %s329
          %s331 = sand.u32 %s33, 1
          %s332 = smul.addr %s331, 4
          %s333 = scalar_lea.vmem [#allocation2], %s332
          %s335 = ssub.s32 64, 64
          %336 = vsyncadd %s330, %s335
          %s337 = smul.addr %s23, 64
          %s338 = scalar_lea.hbm %s0, %s337
          %s340 = sshll.u32 %s333, 4
          %s341 = int_to_ptr.vmem [resolvable:$true] %s340
          %343 = dma.hbm_to_vmem [thread:$0]  %s338, 64, %s341, %s330
        $region52: #{tpu_custom_call.1} parent=47 // pred_fallthru
          _
      $region48: #{tpu_custom_call.1} parent=5 // pred_fallthru
        _
      %p344 = scmp.le.s32.totalorder 1, %s23
      %p345 = scmp.lt.s32.totalorder %s23, 3
      %p346 = pnand %p344, %p345
      %p347 = pneg %p346
      // Predicated region
      $region53: #{tpu_custom_call.1} parent=5 // pred_check
        _
      $region54: #{tpu_custom_call.1} parent=5 // pred_check_branch
        %349 = sbr.rel (%p346) target = $region56
      $region55: #{tpu_custom_call.1} parent=5 // pred_region
        %s350 = ssub.s32 %s23, 1
        %s351 = sand.u32 %s36, 1
        %s352 = scalar_lea.sflag [#allocation3], %s351
        %s353 = sand.u32 %s36, 1
        %s354 = smul.addr %s353, 4
        %s355 = scalar_lea.vmem [#allocation2], %s354
        // Predicated region
        $region57: #{tpu_custom_call.1} parent=55 // pred_check
          %p356 = pneg %p49
        $region58: #{tpu_custom_call.1} parent=55 // pred_check_branch
          %358 = sbr.rel (%p356) target = $region60
        $region59: #{tpu_custom_call.1} parent=55 // pred_region
          %359 = dma.done %s352, 64
        $region60: #{tpu_custom_call.1} parent=55 // pred_fallthru
          _
        // Predicated region
        $region61: #{tpu_custom_call.1} parent=55 // pred_check
          %p360 = pneg %p70
        $region62: #{tpu_custom_call.1} parent=55 // pred_check_branch
          %362 = sbr.rel (%p360) target = $region64
        $region63: #{tpu_custom_call.1} parent=55 // pred_region
          %363 = dma.done [#allocation6], 256
        $region64: #{tpu_custom_call.1} parent=55 // pred_fallthru
          _
        // Predicated region
        $region65: #{tpu_custom_call.1} parent=55 // pred_check
          %p364 = pneg %p91
        $region66: #{tpu_custom_call.1} parent=55 // pred_check_branch
          %366 = sbr.rel (%p364) target = $region68
        $region67: #{tpu_custom_call.1} parent=55 // pred_region
          %367 = dma.done [#allocation6], 256
        $region68: #{tpu_custom_call.1} parent=55 // pred_fallthru
          _
        // Predicated region
        $region69: #{tpu_custom_call.1} parent=55 // pred_check
          %p368 = pneg %p112
        $region70: #{tpu_custom_call.1} parent=55 // pred_check_branch
          %370 = sbr.rel (%p368) target = $region72
        $region71: #{tpu_custom_call.1} parent=55 // pred_region
          %371 = dma.done [#allocation9], 256
        $region72: #{tpu_custom_call.1} parent=55 // pred_fallthru
          _
        // Predicated region
        $region73: #{tpu_custom_call.1} parent=55 // pred_check
          %p372 = pneg %p196
        $region74: #{tpu_custom_call.1} parent=55 // pred_check_branch
          %374 = sbr.rel (%p372) target = $region76
        $region75: #{tpu_custom_call.1} parent=55 // pred_region
          %375 = dma.done [#allocation9], 256
        $region76: #{tpu_custom_call.1} parent=55 // pred_fallthru
          _
        %s376 = sand.u32 %s36, 1
        %s377 = scalar_lea.sflag [#allocation3], %s376
        %s378 = sand.u32 %s36, 1
        %s379 = smul.addr %s378, 4
        %s380 = scalar_lea.vmem [#allocation2], %s379
        %p381 = pneg %p49
        %p382 = pneg %p46
        %p383 = pneg %p70
        %p384 = pneg %p67
        %p385 = pneg %p91
        %p386 = pneg %p88
        %p387 = pneg %p112
        %p388 = pneg %p109
        %p389 = pneg %p133
        %p390 = pneg %p130
        %p391 = pneg %p154
        %p392 = pneg %p151
        %p393 = pneg %p175
        %p394 = pneg %p172
        %p395 = pneg %p196
        %p396 = pneg %p193
        %p397 = pneg %p217
        %p398 = pneg %p214
        %p399 = pneg %p243
        %p400 = pneg %p240
        %s401 = sand.u32 %s230, 1
        %s402 = scalar_lea.sflag [#allocation4], %s401
        %s403 = sand.u32 %s230, 1
        %s404 = smul.addr %s403, 8
        %s405 = scalar_lea.vmem [#allocation11], %s404
        %v407 = vld [vmem:[%s355] sm:$0xf]
        %v408 = vld [vmem:[#allocation5] sm:$0xf]
        %v409 = vld [vmem:[#allocation5 + $0x4] sm:$0xf]
        %v410 = vld [vmem:[#allocation5 + $0x8] sm:$0xf]
        %v411 = vld [vmem:[#allocation5 + $0xc] sm:$0xf]
        %v412 = vld [vmem:[%s4] sm:$0x1]
        %v414 = vlaneseq
        %v415 = vshrl.u32 %v414, 7
        %v416 = vsub.s32 0, %v415
        %v417 = vrot.slane %v412, %v416
        %v423 = vunpack.c.l.b16 %v408
        %v424 = vunpack.c.l.b16 %v409
        %v425 = vunpack.c.l.b16 %v410
        %v426 = vunpack.c.l.b16 %v411
        %v427 = vpack.c.b16 %v424, %v423
        %v428 = vpack.c.b16 %v426, %v425
        %vm431 = vcmask 261120
        %v433 = vsel %vm431, %v407, 0
        %435 = vmatprep.subr.bf16.mxu0 0
        %436 = vmatpush1.bf16.msra.mxu0 0
        %437 = vmatprep.subr.bf16.mxu0 0
        %438 = vmatpush1.bf16.msra.mxu0 0
        %439 = vmatprep.subr.bf16.mxu0 0
        %440 = vmatpush1.bf16.msra.mxu0 0
        %441 = vmatprep.subr.bf16.mxu0 0
        %442 = vmatpush1.bf16.msra.mxu0 0
        %443 = vmatprep.subr.bf16.mxu0 0
        %444 = vmatpush1.bf16.msra.mxu0 0
        %445 = vmatprep.subr.bf16.mxu0 0
        %446 = vmatpush1.bf16.msra.mxu0 0
        %447 = vmatprep.subr.bf16.mxu0 0
        %448 = vmatpush1.bf16.msra.mxu0 %v428
        %449 = vmatprep.subr.bf16.mxu0 0
        %450 = vmatpush1.bf16.msra.mxu0 %v427
        %451 = vmatprep.subr.bf16.mxu0 0
        %452 = vmatpush2.bf16.msra.mxu0 0
        %453 = vmatprep.subr.bf16.mxu0 0
        %454 = vmatpush2.bf16.msra.mxu0 0
        %455 = vmatprep.subr.bf16.mxu0 0
        %456 = vmatpush2.bf16.msra.mxu0 0
        %457 = vmatprep.subr.bf16.mxu0 0
        %458 = vmatpush2.bf16.msra.mxu0 0
        %459 = vmatprep.subr.bf16.mxu0 0
        %460 = vmatpush2.bf16.msra.mxu0 0
        %461 = vmatprep.subr.bf16.mxu0 0
        %462 = vmatpush2.bf16.msra.mxu0 0
        %463 = vmatprep.subr.bf16.mxu0 0
        %464 = vmatpush2.bf16.msra.mxu0 0
        %465 = vmatprep.subr.bf16.mxu0 0
        %466 = vmatpush2.bf16.msra.mxu0 0
        %467 = vmatprep.mubr.bf16.mxu0 0
        %468 = vmatmul.mubr.bf16.gmra.mxu0 %v433
        %v469 = vpop.f32.mrf.mxu0
        %v470 = vadd.f32 %v417, %v469
        %v471 = vpop.f32.mrf.mxu0
        %v472 = vpop.f32.mrf.mxu0
        %v473 = vpop.f32.mrf.mxu0
        %474 = vdwg.mxu0
        %v475 = vpack.c.bf16 %v470, %v470
        %v476 = vld [vmem:[#allocation7] sm:$0xf]
        %v477 = vld [vmem:[#allocation7 + $0x4] sm:$0xf]
        %v478 = vld [vmem:[#allocation7 + $0x8] sm:$0xf]
        %v479 = vld [vmem:[#allocation7 + $0xc] sm:$0xf]
        %v480 = vld [vmem:[%s5] sm:$0x1]
        %v482 = vlaneseq
        %v483 = vshrl.u32 %v482, 7
        %v484 = vsub.s32 0, %v483
        %v485 = vrot.slane %v480, %v484
        %v491 = vunpack.c.l.b16 %v476
        %v492 = vunpack.c.l.b16 %v477
        %v493 = vunpack.c.l.b16 %v478
        %v494 = vunpack.c.l.b16 %v479
        %v495 = vpack.c.b16 %v492, %v491
        %v496 = vpack.c.b16 %v494, %v493
        %499 = vmatprep.subr.bf16.mxu0 0
        %500 = vmatpush1.bf16.msra.mxu0 0
        %501 = vmatprep.subr.bf16.mxu0 0
        %502 = vmatpush1.bf16.msra.mxu0 0
        %503 = vmatprep.subr.bf16.mxu0 0
        %504 = vmatpush1.bf16.msra.mxu0 0
        %505 = vmatprep.subr.bf16.mxu0 0
        %506 = vmatpush1.bf16.msra.mxu0 0
        %507 = vmatprep.subr.bf16.mxu0 0
        %508 = vmatpush1.bf16.msra.mxu0 0
        %509 = vmatprep.subr.bf16.mxu0 0
        %510 = vmatpush1.bf16.msra.mxu0 0
        %511 = vmatprep.subr.bf16.mxu0 0
        %512 = vmatpush1.bf16.msra.mxu0 %v496
        %513 = vmatprep.subr.bf16.mxu0 0
        %514 = vmatpush1.bf16.msra.mxu0 %v495
        %515 = vmatprep.subr.bf16.mxu0 0
        %516 = vmatpush2.bf16.msra.mxu0 0
        %517 = vmatprep.subr.bf16.mxu0 0
        %518 = vmatpush2.bf16.msra.mxu0 0
        %519 = vmatprep.subr.bf16.mxu0 0
        %520 = vmatpush2.bf16.msra.mxu0 0
        %521 = vmatprep.subr.bf16.mxu0 0
        %522 = vmatpush2.bf16.msra.mxu0 0
        %523 = vmatprep.subr.bf16.mxu0 0
        %524 = vmatpush2.bf16.msra.mxu0 0
        %525 = vmatprep.subr.bf16.mxu0 0
        %526 = vmatpush2.bf16.msra.mxu0 0
        %527 = vmatprep.subr.bf16.mxu0 0
        %528 = vmatpush2.bf16.msra.mxu0 0
        %529 = vmatprep.subr.bf16.mxu0 0
        %530 = vmatpush2.bf16.msra.mxu0 0
        %531 = vmatprep.mubr.bf16.mxu0 0
        %532 = vmatmul.mubr.bf16.gmra.mxu0 %v433
        %v533 = vpop.f32.mrf.mxu0
        %v534 = vadd.f32 %v485, %v533
        %v535 = vpop.f32.mrf.mxu0
        %v536 = vpop.f32.mrf.mxu0
        %v537 = vpop.f32.mrf.mxu0
        %538 = vdwg.mxu0
        %v539 = vpack.c.bf16 %v534, %v534
        %v540 = vld [vmem:[#allocation8] sm:$0xf]
        %v541 = vld [vmem:[#allocation8 + $0x4] sm:$0xf]
        %v542 = vld [vmem:[#allocation8 + $0x8] sm:$0xf]
        %v543 = vld [vmem:[#allocation8 + $0xc] sm:$0xf]
        %v544 = vld [vmem:[%s6] sm:$0x1]
        %v546 = vlaneseq
        %v547 = vshrl.u32 %v546, 7
        %v548 = vsub.s32 0, %v547
        %v549 = vrot.slane %v544, %v548
        %v555 = vunpack.c.l.b16 %v540
        %v556 = vunpack.c.l.b16 %v541
        %v557 = vunpack.c.l.b16 %v542
        %v558 = vunpack.c.l.b16 %v543
        %v559 = vpack.c.b16 %v556, %v555
        %v560 = vpack.c.b16 %v558, %v557
        %563 = vmatprep.subr.bf16.mxu0 0
        %564 = vmatpush1.bf16.msra.mxu0 0
        %565 = vmatprep.subr.bf16.mxu0 0
        %566 = vmatpush1.bf16.msra.mxu0 0
        %567 = vmatprep.subr.bf16.mxu0 0
        %568 = vmatpush1.bf16.msra.mxu0 0
        %569 = vmatprep.subr.bf16.mxu0 0
        %570 = vmatpush1.bf16.msra.mxu0 0
        %571 = vmatprep.subr.bf16.mxu0 0
        %572 = vmatpush1.bf16.msra.mxu0 0
        %573 = vmatprep.subr.bf16.mxu0 0
        %574 = vmatpush1.bf16.msra.mxu0 0
        %575 = vmatprep.subr.bf16.mxu0 0
        %576 = vmatpush1.bf16.msra.mxu0 %v560
        %577 = vmatprep.subr.bf16.mxu0 0
        %578 = vmatpush1.bf16.msra.mxu0 %v559
        %579 = vmatprep.subr.bf16.mxu0 0
        %580 = vmatpush2.bf16.msra.mxu0 0
        %581 = vmatprep.subr.bf16.mxu0 0
        %582 = vmatpush2.bf16.msra.mxu0 0
        %583 = vmatprep.subr.bf16.mxu0 0
        %584 = vmatpush2.bf16.msra.mxu0 0
        %585 = vmatprep.subr.bf16.mxu0 0
        %586 = vmatpush2.bf16.msra.mxu0 0
        %587 = vmatprep.subr.bf16.mxu0 0
        %588 = vmatpush2.bf16.msra.mxu0 0
        %589 = vmatprep.subr.bf16.mxu0 0
        %590 = vmatpush2.bf16.msra.mxu0 0
        %591 = vmatprep.subr.bf16.mxu0 0
        %592 = vmatpush2.bf16.msra.mxu0 0
        %593 = vmatprep.subr.bf16.mxu0 0
        %594 = vmatpush2.bf16.msra.mxu0 0
        %595 = vmatprep.mubr.bf16.mxu0 0
        %596 = vmatmul.mubr.bf16.gmra.mxu0 %v433
        %v597 = vpop.f32.mrf.mxu0
        %v598 = vadd.f32 %v549, %v597
        %v599 = vpop.f32.mrf.mxu0
        %v600 = vpop.f32.mrf.mxu0
        %v601 = vpop.f32.mrf.mxu0
        %602 = vdwg.mxu0
        %v603 = vpack.c.bf16 %v598, %v598
        %vm604 = vcmask 64512
        %v606 = vsel %vm604, %v475, 0
        %v609 = vsel %vm604, %v539, 0
        %611 = vmatprep.subr.bf16.mxu0 0
        %612 = vmatpush1.bf16.xpose.msra.mxu0 0
        %613 = vmatprep.subr.bf16.mxu0 0
        %614 = vmatpush1.bf16.xpose.msra.mxu0 0
        %615 = vmatprep.subr.bf16.mxu0 0
        %616 = vmatpush1.bf16.xpose.msra.mxu0 0
        %617 = vmatprep.subr.bf16.mxu0 0
        %618 = vmatpush1.bf16.xpose.msra.mxu0 0
        %619 = vmatprep.subr.bf16.mxu0 0
        %620 = vmatpush1.bf16.xpose.msra.mxu0 0
        %621 = vmatprep.subr.bf16.mxu0 0
        %622 = vmatpush1.bf16.xpose.msra.mxu0 0
        %623 = vmatprep.subr.bf16.mxu0 0
        %624 = vmatpush1.bf16.xpose.msra.mxu0 0
        %625 = vmatprep.subr.bf16.mxu0 0
        %626 = vmatpush1.bf16.xpose.msra.mxu0 %v609
        %627 = vmatprep.subr.bf16.mxu0 0
        %628 = vmatpush2.bf16.xpose.msra.mxu0 0
        %629 = vmatprep.subr.bf16.mxu0 0
        %630 = vmatpush2.bf16.xpose.msra.mxu0 0
        %631 = vmatprep.subr.bf16.mxu0 0
        %632 = vmatpush2.bf16.xpose.msra.mxu0 0
        %633 = vmatprep.subr.bf16.mxu0 0
        %634 = vmatpush2.bf16.xpose.msra.mxu0 0
        %635 = vmatprep.subr.bf16.mxu0 0
        %636 = vmatpush2.bf16.xpose.msra.mxu0 0
        %637 = vmatprep.subr.bf16.mxu0 0
        %638 = vmatpush2.bf16.xpose.msra.mxu0 0
        %639 = vmatprep.subr.bf16.mxu0 0
        %640 = vmatpush2.bf16.xpose.msra.mxu0 0
        %641 = vmatprep.subr.bf16.mxu0 0
        %642 = vmatpush2.bf16.xpose.msra.mxu0 0
        %643 = vmatprep.mubr.bf16.mxu0 0
        %644 = vmatmul.mubr.bf16.gmra.mxu0 %v606
        %v645 = vpop.f32.mrf.mxu0
        %v646 = vadd.f32 0.0, %v645
        %v647 = vpop.f32.mrf.mxu0
        %v648 = vpop.f32.mrf.mxu0
        %v649 = vpop.f32.mrf.mxu0
        %650 = vdwg.mxu0
        %v651 = vsel %vm604, %v646, -inf
        %652 = vmax.xlane.f32.xlu0 %v651
        %v653 = vpop.xlane.xlu0 %652
        %v654 = vsub.f32 %v646, %v653
        %v655 = vmul.f32 %v654, 1.442695
        %v656 = vpow.pop %v655
        %v657 = vsel %vm604, %v656, 0.0
        %658 = vadd.xlane.f32.xlu0 %v657
        %v659 = vpop.xlane.xlu0 %658
        %v660 = vrcp.pop %v659
        %v661 = vmul.f32 %v656, %v660
        %v662 = vpack.c.bf16 %v661, %v661
        %v664 = vsel %vm604, %v662, 0
        %vm666 = vcmask 1043456
        %v668 = vsel %vm666, %v603, 0
        %670 = vmatprep.subr.bf16.mxu0 0
        %671 = vmatpush1.bf16.msra.mxu0 0
        %672 = vmatprep.subr.bf16.mxu0 0
        %673 = vmatpush1.bf16.msra.mxu0 0
        %674 = vmatprep.subr.bf16.mxu0 0
        %675 = vmatpush1.bf16.msra.mxu0 0
        %676 = vmatprep.subr.bf16.mxu0 0
        %677 = vmatpush1.bf16.msra.mxu0 0
        %678 = vmatprep.subr.bf16.mxu0 0
        %679 = vmatpush1.bf16.msra.mxu0 0
        %680 = vmatprep.subr.bf16.mxu0 0
        %681 = vmatpush1.bf16.msra.mxu0 0
        %682 = vmatprep.subr.bf16.mxu0 0
        %683 = vmatpush1.bf16.msra.mxu0 0
        %684 = vmatprep.subr.bf16.mxu0 0
        %685 = vmatpush1.bf16.msra.mxu0 %v668
        %686 = vmatprep.subr.bf16.mxu0 0
        %687 = vmatpush2.bf16.msra.mxu0 0
        %688 = vmatprep.subr.bf16.mxu0 0
        %689 = vmatpush2.bf16.msra.mxu0 0
        %690 = vmatprep.subr.bf16.mxu0 0
        %691 = vmatpush2.bf16.msra.mxu0 0
        %692 = vmatprep.subr.bf16.mxu0 0
        %693 = vmatpush2.bf16.msra.mxu0 0
        %694 = vmatprep.subr.bf16.mxu0 0
        %695 = vmatpush2.bf16.msra.mxu0 0
        %696 = vmatprep.subr.bf16.mxu0 0
        %697 = vmatpush2.bf16.msra.mxu0 0
        %698 = vmatprep.subr.bf16.mxu0 0
        %699 = vmatpush2.bf16.msra.mxu0 0
        %700 = vmatprep.subr.bf16.mxu0 0
        %701 = vmatpush2.bf16.msra.mxu0 0
        %702 = vmatprep.mubr.bf16.mxu0 0
        %703 = vmatmul.mubr.bf16.gmra.mxu0 %v664
        %v704 = vpop.f32.mrf.mxu0
        %v705 = vadd.f32 0.0, %v704
        %v706 = vpop.f32.mrf.mxu0
        %v707 = vpop.f32.mrf.mxu0
        %v708 = vpop.f32.mrf.mxu0
        %709 = vdwg.mxu0
        %711 = vrot.lane.b32.xlu0 %v475, 120
        %v712 = vpop.permute.xlu0 %711
        %714 = vrot.lane.b32.xlu0 %v539, 120
        %v715 = vpop.permute.xlu0 %714
        %v717 = vsel %vm604, %v712, 0
        %v720 = vsel %vm604, %v715, 0
        %722 = vmatprep.subr.bf16.mxu0 0
        %723 = vmatpush1.bf16.xpose.msra.mxu0 0
        %724 = vmatprep.subr.bf16.mxu0 0
        %725 = vmatpush1.bf16.xpose.msra.mxu0 0
        %726 = vmatprep.subr.bf16.mxu0 0
        %727 = vmatpush1.bf16.xpose.msra.mxu0 0
        %728 = vmatprep.subr.bf16.mxu0 0
        %729 = vmatpush1.bf16.xpose.msra.mxu0 0
        %730 = vmatprep.subr.bf16.mxu0 0
        %731 = vmatpush1.bf16.xpose.msra.mxu0 0
        %732 = vmatprep.subr.bf16.mxu0 0
        %733 = vmatpush1.bf16.xpose.msra.mxu0 0
        %734 = vmatprep.subr.bf16.mxu0 0
        %735 = vmatpush1.bf16.xpose.msra.mxu0 0
        %736 = vmatprep.subr.bf16.mxu0 0
        %737 = vmatpush1.bf16.xpose.msra.mxu0 %v720
        %738 = vmatprep.subr.bf16.mxu0 0
        %739 = vmatpush2.bf16.xpose.msra.mxu0 0
        %740 = vmatprep.subr.bf16.mxu0 0
        %741 = vmatpush2.bf16.xpose.msra.mxu0 0
        %742 = vmatprep.subr.bf16.mxu0 0
        %743 = vmatpush2.bf16.xpose.msra.mxu0 0
        %744 = vmatprep.subr.bf16.mxu0 0
        %745 = vmatpush2.bf16.xpose.msra.mxu0 0
        %746 = vmatprep.subr.bf16.mxu0 0
        %747 = vmatpush2.bf16.xpose.msra.mxu0 0
        %748 = vmatprep.subr.bf16.mxu0 0
        %749 = vmatpush2.bf16.xpose.msra.mxu0 0
        %750 = vmatprep.subr.bf16.mxu0 0
        %751 = vmatpush2.bf16.xpose.msra.mxu0 0
        %752 = vmatprep.subr.bf16.mxu0 0
        %753 = vmatpush2.bf16.xpose.msra.mxu0 0
        %754 = vmatprep.mubr.bf16.mxu0 0
        %755 = vmatmul.mubr.bf16.gmra.mxu0 %v717
        %v756 = vpop.f32.mrf.mxu0
        %v757 = vadd.f32 0.0, %v756
        %v758 = vpop.f32.mrf.mxu0
        %v759 = vpop.f32.mrf.mxu0
        %v760 = vpop.f32.mrf.mxu0
        %761 = vdwg.mxu0
        %v762 = vsel %vm604, %v757, -inf
        %763 = vmax.xlane.f32.xlu0 %v762
        %v764 = vpop.xlane.xlu0 %763
        %v765 = vsub.f32 %v757, %v764
        %v766 = vmul.f32 %v765, 1.442695
        %v767 = vpow.pop %v766
        %v768 = vsel %vm604, %v767, 0.0
        %769 = vadd.xlane.f32.xlu0 %v768
        %v770 = vpop.xlane.xlu0 %769
        %v771 = vrcp.pop %v770
        %v772 = vmul.f32 %v767, %v771
        %v773 = vpack.c.bf16 %v772, %v772
        %775 = vrot.lane.b32.xlu0 %v603, 120
        %v776 = vpop.permute.xlu0 %775
        %v778 = vsel %vm604, %v773, 0
        %v781 = vsel %vm666, %v776, 0
        %783 = vmatprep.subr.bf16.mxu0 0
        %784 = vmatpush1.bf16.msra.mxu0 0
        %785 = vmatprep.subr.bf16.mxu0 0
        %786 = vmatpush1.bf16.msra.mxu0 0
        %787 = vmatprep.subr.bf16.mxu0 0
        %788 = vmatpush1.bf16.msra.mxu0 0
        %789 = vmatprep.subr.bf16.mxu0 0
        %790 = vmatpush1.bf16.msra.mxu0 0
        %791 = vmatprep.subr.bf16.mxu0 0
        %792 = vmatpush1.bf16.msra.mxu0 0
        %793 = vmatprep.subr.bf16.mxu0 0
        %794 = vmatpush1.bf16.msra.mxu0 0
        %795 = vmatprep.subr.bf16.mxu0 0
        %796 = vmatpush1.bf16.msra.mxu0 0
        %797 = vmatprep.subr.bf16.mxu0 0
        %798 = vmatpush1.bf16.msra.mxu0 %v781
        %799 = vmatprep.subr.bf16.mxu0 0
        %800 = vmatpush2.bf16.msra.mxu0 0
        %801 = vmatprep.subr.bf16.mxu0 0
        %802 = vmatpush2.bf16.msra.mxu0 0
        %803 = vmatprep.subr.bf16.mxu0 0
        %804 = vmatpush2.bf16.msra.mxu0 0
        %805 = vmatprep.subr.bf16.mxu0 0
        %806 = vmatpush2.bf16.msra.mxu0 0
        %807 = vmatprep.subr.bf16.mxu0 0
        %808 = vmatpush2.bf16.msra.mxu0 0
        %809 = vmatprep.subr.bf16.mxu0 0
        %810 = vmatpush2.bf16.msra.mxu0 0
        %811 = vmatprep.subr.bf16.mxu0 0
        %812 = vmatpush2.bf16.msra.mxu0 0
        %813 = vmatprep.subr.bf16.mxu0 0
        %814 = vmatpush2.bf16.msra.mxu0 0
        %815 = vmatprep.mubr.bf16.mxu0 0
        %816 = vmatmul.mubr.bf16.gmra.mxu0 %v778
        %v817 = vpop.f32.mrf.mxu0
        %v818 = vadd.f32 0.0, %v817
        %v819 = vpop.f32.mrf.mxu0
        %v820 = vpop.f32.mrf.mxu0
        %v821 = vpop.f32.mrf.mxu0
        %822 = vdwg.mxu0
        %823 = vrot.lane.b32.xlu0 %v475, 112
        %v824 = vpop.permute.xlu0 %823
        %825 = vrot.lane.b32.xlu0 %v539, 112
        %v826 = vpop.permute.xlu0 %825
        %v828 = vsel %vm604, %v824, 0
        %v831 = vsel %vm604, %v826, 0
        %833 = vmatprep.subr.bf16.mxu0 0
        %834 = vmatpush1.bf16.xpose.msra.mxu0 0
        %835 = vmatprep.subr.bf16.mxu0 0
        %836 = vmatpush1.bf16.xpose.msra.mxu0 0
        %837 = vmatprep.subr.bf16.mxu0 0
        %838 = vmatpush1.bf16.xpose.msra.mxu0 0
        %839 = vmatprep.subr.bf16.mxu0 0
        %840 = vmatpush1.bf16.xpose.msra.mxu0 0
        %841 = vmatprep.subr.bf16.mxu0 0
        %842 = vmatpush1.bf16.xpose.msra.mxu0 0
        %843 = vmatprep.subr.bf16.mxu0 0
        %844 = vmatpush1.bf16.xpose.msra.mxu0 0
        %845 = vmatprep.subr.bf16.mxu0 0
        %846 = vmatpush1.bf16.xpose.msra.mxu0 0
        %847 = vmatprep.subr.bf16.mxu0 0
        %848 = vmatpush1.bf16.xpose.msra.mxu0 %v831
        %849 = vmatprep.subr.bf16.mxu0 0
        %850 = vmatpush2.bf16.xpose.msra.mxu0 0
        %851 = vmatprep.subr.bf16.mxu0 0
        %852 = vmatpush2.bf16.xpose.msra.mxu0 0
        %853 = vmatprep.subr.bf16.mxu0 0
        %854 = vmatpush2.bf16.xpose.msra.mxu0 0
        %855 = vmatprep.subr.bf16.mxu0 0
        %856 = vmatpush2.bf16.xpose.msra.mxu0 0
        %857 = vmatprep.subr.bf16.mxu0 0
        %858 = vmatpush2.bf16.xpose.msra.mxu0 0
        %859 = vmatprep.subr.bf16.mxu0 0
        %860 = vmatpush2.bf16.xpose.msra.mxu0 0
        %861 = vmatprep.subr.bf16.mxu0 0
        %862 = vmatpush2.bf16.xpose.msra.mxu0 0
        %863 = vmatprep.subr.bf16.mxu0 0
        %864 = vmatpush2.bf16.xpose.msra.mxu0 0
        %865 = vmatprep.mubr.bf16.mxu0 0
        %866 = vmatmul.mubr.bf16.gmra.mxu0 %v828
        %v867 = vpop.f32.mrf.mxu0
        %v868 = vadd.f32 0.0, %v867
        %v869 = vpop.f32.mrf.mxu0
        %v870 = vpop.f32.mrf.mxu0
        %v871 = vpop.f32.mrf.mxu0
        %872 = vdwg.mxu0
        %v873 = vsel %vm604, %v868, -inf
        %874 = vmax.xlane.f32.xlu0 %v873
        %v875 = vpop.xlane.xlu0 %874
        %v876 = vsub.f32 %v868, %v875
        %v877 = vmul.f32 %v876, 1.442695
        %v878 = vpow.pop %v877
        %v879 = vsel %vm604, %v878, 0.0
        %880 = vadd.xlane.f32.xlu0 %v879
        %v881 = vpop.xlane.xlu0 %880
        %v882 = vrcp.pop %v881
        %v883 = vmul.f32 %v878, %v882
        %v884 = vpack.c.bf16 %v883, %v883
        %885 = vrot.lane.b32.xlu0 %v603, 112
        %v886 = vpop.permute.xlu0 %885
        %v888 = vsel %vm604, %v884, 0
        %v891 = vsel %vm666, %v886, 0
        %893 = vmatprep.subr.bf16.mxu0 0
        %894 = vmatpush1.bf16.msra.mxu0 0
        %895 = vmatprep.subr.bf16.mxu0 0
        %896 = vmatpush1.bf16.msra.mxu0 0
        %897 = vmatprep.subr.bf16.mxu0 0
        %898 = vmatpush1.bf16.msra.mxu0 0
        %899 = vmatprep.subr.bf16.mxu0 0
        %900 = vmatpush1.bf16.msra.mxu0 0
        %901 = vmatprep.subr.bf16.mxu0 0
        %902 = vmatpush1.bf16.msra.mxu0 0
        %903 = vmatprep.subr.bf16.mxu0 0
        %904 = vmatpush1.bf16.msra.mxu0 0
        %905 = vmatprep.subr.bf16.mxu0 0
        %906 = vmatpush1.bf16.msra.mxu0 0
        %907 = vmatprep.subr.bf16.mxu0 0
        %908 = vmatpush1.bf16.msra.mxu0 %v891
        %909 = vmatprep.subr.bf16.mxu0 0
        %910 = vmatpush2.bf16.msra.mxu0 0
        %911 = vmatprep.subr.bf16.mxu0 0
        %912 = vmatpush2.bf16.msra.mxu0 0
        %913 = vmatprep.subr.bf16.mxu0 0
        %914 = vmatpush2.bf16.msra.mxu0 0
        %915 = vmatprep.subr.bf16.mxu0 0
        %916 = vmatpush2.bf16.msra.mxu0 0
        %917 = vmatprep.subr.bf16.mxu0 0
        %918 = vmatpush2.bf16.msra.mxu0 0
        %919 = vmatprep.subr.bf16.mxu0 0
        %920 = vmatpush2.bf16.msra.mxu0 0
        %921 = vmatprep.subr.bf16.mxu0 0
        %922 = vmatpush2.bf16.msra.mxu0 0
        %923 = vmatprep.subr.bf16.mxu0 0
        %924 = vmatpush2.bf16.msra.mxu0 0
        %925 = vmatprep.mubr.bf16.mxu0 0
        %926 = vmatmul.mubr.bf16.gmra.mxu0 %v888
        %v927 = vpop.f32.mrf.mxu0
        %v928 = vadd.f32 0.0, %v927
        %v929 = vpop.f32.mrf.mxu0
        %v930 = vpop.f32.mrf.mxu0
        %v931 = vpop.f32.mrf.mxu0
        %932 = vdwg.mxu0
        %933 = vrot.lane.b32.xlu0 %v475, 104
        %v934 = vpop.permute.xlu0 %933
        %935 = vrot.lane.b32.xlu0 %v539, 104
        %v936 = vpop.permute.xlu0 %935
        %v938 = vsel %vm604, %v934, 0
        %v941 = vsel %vm604, %v936, 0
        %943 = vmatprep.subr.bf16.mxu0 0
        %944 = vmatpush1.bf16.xpose.msra.mxu0 0
        %945 = vmatprep.subr.bf16.mxu0 0
        %946 = vmatpush1.bf16.xpose.msra.mxu0 0
        %947 = vmatprep.subr.bf16.mxu0 0
        %948 = vmatpush1.bf16.xpose.msra.mxu0 0
        %949 = vmatprep.subr.bf16.mxu0 0
        %950 = vmatpush1.bf16.xpose.msra.mxu0 0
        %951 = vmatprep.subr.bf16.mxu0 0
        %952 = vmatpush1.bf16.xpose.msra.mxu0 0
        %953 = vmatprep.subr.bf16.mxu0 0
        %954 = vmatpush1.bf16.xpose.msra.mxu0 0
        %955 = vmatprep.subr.bf16.mxu0 0
        %956 = vmatpush1.bf16.xpose.msra.mxu0 0
        %957 = vmatprep.subr.bf16.mxu0 0
        %958 = vmatpush1.bf16.xpose.msra.mxu0 %v941
        %959 = vmatprep.subr.bf16.mxu0 0
        %960 = vmatpush2.bf16.xpose.msra.mxu0 0
        %961 = vmatprep.subr.bf16.mxu0 0
        %962 = vmatpush2.bf16.xpose.msra.mxu0 0
        %963 = vmatprep.subr.bf16.mxu0 0
        %964 = vmatpush2.bf16.xpose.msra.mxu0 0
        %965 = vmatprep.subr.bf16.mxu0 0
        %966 = vmatpush2.bf16.xpose.msra.mxu0 0
        %967 = vmatprep.subr.bf16.mxu0 0
        %968 = vmatpush2.bf16.xpose.msra.mxu0 0
        %969 = vmatprep.subr.bf16.mxu0 0
        %970 = vmatpush2.bf16.xpose.msra.mxu0 0
        %971 = vmatprep.subr.bf16.mxu0 0
        %972 = vmatpush2.bf16.xpose.msra.mxu0 0
        %973 = vmatprep.subr.bf16.mxu0 0
        %974 = vmatpush2.bf16.xpose.msra.mxu0 0
        %975 = vmatprep.mubr.bf16.mxu0 0
        %976 = vmatmul.mubr.bf16.gmra.mxu0 %v938
        %v977 = vpop.f32.mrf.mxu0
        %v978 = vadd.f32 0.0, %v977
        %v979 = vpop.f32.mrf.mxu0
        %v980 = vpop.f32.mrf.mxu0
        %v981 = vpop.f32.mrf.mxu0
        %982 = vdwg.mxu0
        %v983 = vsel %vm604, %v978, -inf
        %984 = vmax.xlane.f32.xlu0 %v983
        %v985 = vpop.xlane.xlu0 %984
        %v986 = vsub.f32 %v978, %v985
        %v987 = vmul.f32 %v986, 1.442695
        %v988 = vpow.pop %v987
        %v989 = vsel %vm604, %v988, 0.0
        %990 = vadd.xlane.f32.xlu0 %v989
        %v991 = vpop.xlane.xlu0 %990
        %v992 = vrcp.pop %v991
        %v993 = vmul.f32 %v988, %v992
        %v994 = vpack.c.bf16 %v993, %v993
        %995 = vrot.lane.b32.xlu0 %v603, 104
        %v996 = vpop.permute.xlu0 %995
        %v998 = vsel %vm604, %v994, 0
        %v1001 = vsel %vm666, %v996, 0
        %1003 = vmatprep.subr.bf16.mxu0 0
        %1004 = vmatpush1.bf16.msra.mxu0 0
        %1005 = vmatprep.subr.bf16.mxu0 0
        %1006 = vmatpush1.bf16.msra.mxu0 0
        %1007 = vmatprep.subr.bf16.mxu0 0
        %1008 = vmatpush1.bf16.msra.mxu0 0
        %1009 = vmatprep.subr.bf16.mxu0 0
        %1010 = vmatpush1.bf16.msra.mxu0 0
        %1011 = vmatprep.subr.bf16.mxu0 0
        %1012 = vmatpush1.bf16.msra.mxu0 0
        %1013 = vmatprep.subr.bf16.mxu0 0
        %1014 = vmatpush1.bf16.msra.mxu0 0
        %1015 = vmatprep.subr.bf16.mxu0 0
        %1016 = vmatpush1.bf16.msra.mxu0 0
        %1017 = vmatprep.subr.bf16.mxu0 0
        %1018 = vmatpush1.bf16.msra.mxu0 %v1001
        %1019 = vmatprep.subr.bf16.mxu0 0
        %1020 = vmatpush2.bf16.msra.mxu0 0
        %1021 = vmatprep.subr.bf16.mxu0 0
        %1022 = vmatpush2.bf16.msra.mxu0 0
        %1023 = vmatprep.subr.bf16.mxu0 0
        %1024 = vmatpush2.bf16.msra.mxu0 0
        %1025 = vmatprep.subr.bf16.mxu0 0
        %1026 = vmatpush2.bf16.msra.mxu0 0
        %1027 = vmatprep.subr.bf16.mxu0 0
        %1028 = vmatpush2.bf16.msra.mxu0 0
        %1029 = vmatprep.subr.bf16.mxu0 0
        %1030 = vmatpush2.bf16.msra.mxu0 0
        %1031 = vmatprep.subr.bf16.mxu0 0
        %1032 = vmatpush2.bf16.msra.mxu0 0
        %1033 = vmatprep.subr.bf16.mxu0 0
        %1034 = vmatpush2.bf16.msra.mxu0 0
        %1035 = vmatprep.mubr.bf16.mxu0 0
        %1036 = vmatmul.mubr.bf16.gmra.mxu0 %v998
        %v1037 = vpop.f32.mrf.mxu0
        %v1038 = vadd.f32 0.0, %v1037
        %v1039 = vpop.f32.mrf.mxu0
        %v1040 = vpop.f32.mrf.mxu0
        %v1041 = vpop.f32.mrf.mxu0
        %1042 = vdwg.mxu0
        %1044 = vrot.lane.b32.xlu0 %v818, 8
        %v1045 = vpop.permute.xlu0 %1044
        %1048 = vrot.lane.b32.xlu0 %v928, 16
        %v1049 = vpop.permute.xlu0 %1048
        %1052 = vrot.lane.b32.xlu0 %v1038, 24
        %v1053 = vpop.permute.xlu0 %1052
        %v1055 = vsel %vm604, %v705, %v1045
        %vm1056 = vcmask 130048
        %v1057 = vsel %vm1056, %v1055, %v1049
        %vm1058 = vcmask 195584
        %v1059 = vsel %vm1058, %v1057, %v1053
        %v1060 = vpack.c.bf16 %v1059, %v1059
        %v1061 = vld [vmem:[#allocation10] sm:$0xf]
        %v1062 = vld [vmem:[#allocation10 + $0x4] sm:$0xf]
        %v1063 = vld [vmem:[#allocation10 + $0x8] sm:$0xf]
        %v1064 = vld [vmem:[#allocation10 + $0xc] sm:$0xf]
        %v1065 = vld [vmem:[%s8] sm:$0x1]
        %v1067 = vlaneseq
        %v1068 = vshrl.u32 %v1067, 7
        %v1069 = vsub.s32 0, %v1068
        %v1070 = vrot.slane %v1065, %v1069
        %v1076 = vunpack.c.l.b16 %v1061
        %v1077 = vunpack.c.l.b16 %v1062
        %v1078 = vunpack.c.l.b16 %v1063
        %v1079 = vunpack.c.l.b16 %v1064
        %v1080 = vpack.c.b16 %v1077, %v1076
        %v1081 = vpack.c.b16 %v1079, %v1078
        %v1085 = vsel %vm431, %v1060, 0
        %1087 = vmatprep.subr.bf16.mxu0 0
        %1088 = vmatpush1.bf16.msra.mxu0 0
        %1089 = vmatprep.subr.bf16.mxu0 0
        %1090 = vmatpush1.bf16.msra.mxu0 0
        %1091 = vmatprep.subr.bf16.mxu0 0
        %1092 = vmatpush1.bf16.msra.mxu0 0
        %1093 = vmatprep.subr.bf16.mxu0 0
        %1094 = vmatpush1.bf16.msra.mxu0 0
        %1095 = vmatprep.subr.bf16.mxu0 0
        %1096 = vmatpush1.bf16.msra.mxu0 0
        %1097 = vmatprep.subr.bf16.mxu0 0
        %1098 = vmatpush1.bf16.msra.mxu0 0
        %1099 = vmatprep.subr.bf16.mxu0 0
        %1100 = vmatpush1.bf16.msra.mxu0 %v1081
        %1101 = vmatprep.subr.bf16.mxu0 0
        %1102 = vmatpush1.bf16.msra.mxu0 %v1080
        %1103 = vmatprep.subr.bf16.mxu0 0
        %1104 = vmatpush2.bf16.msra.mxu0 0
        %1105 = vmatprep.subr.bf16.mxu0 0
        %1106 = vmatpush2.bf16.msra.mxu0 0
        %1107 = vmatprep.subr.bf16.mxu0 0
        %1108 = vmatpush2.bf16.msra.mxu0 0
        %1109 = vmatprep.subr.bf16.mxu0 0
        %1110 = vmatpush2.bf16.msra.mxu0 0
        %1111 = vmatprep.subr.bf16.mxu0 0
        %1112 = vmatpush2.bf16.msra.mxu0 0
        %1113 = vmatprep.subr.bf16.mxu0 0
        %1114 = vmatpush2.bf16.msra.mxu0 0
        %1115 = vmatprep.subr.bf16.mxu0 0
        %1116 = vmatpush2.bf16.msra.mxu0 0
        %1117 = vmatprep.subr.bf16.mxu0 0
        %1118 = vmatpush2.bf16.msra.mxu0 0
        %1119 = vmatprep.mubr.bf16.mxu0 0
        %1120 = vmatmul.mubr.bf16.gmra.mxu0 %v1085
        %v1121 = vpop.f32.mrf.mxu0
        %v1122 = vadd.f32 %v1070, %v1121
        %v1123 = vpop.f32.mrf.mxu0
        %v1124 = vpop.f32.mrf.mxu0
        %v1125 = vpop.f32.mrf.mxu0
        %1126 = vdwg.mxu0
        %1127 = vst.msk [vmem:[%s405] sm:$0xff] %vm431, %v1122
        %s1128 = sand.u32 %s230, 1
        %s1129 = scalar_lea.sflag [#allocation4], %s1128
        %s1130 = sand.u32 %s230, 1
        %s1131 = smul.addr %s1130, 8
        %s1132 = scalar_lea.vmem [#allocation11], %s1131
        // Predicated region
        $region77: #{tpu_custom_call.1} parent=55 // pred_check
          %p1133 = pneg %p240
        $region78: #{tpu_custom_call.1} parent=55 // pred_check_branch
          %1135 = sbr.rel (%p1133) target = $region80
        $region79: #{tpu_custom_call.1} parent=55 // pred_region
          %s1137 = ssub.s32 128, 128
          %1138 = vsyncadd %s1129, %s1137
          %s1139 = smul.addr %s28, 128
          %s1140 = scalar_lea.hbm %s9, %s1139
          %s1142 = sshll.u32 %s1132, 4
          %s1143 = int_to_ptr.vmem [resolvable:$true] %s1142
          %1145 = dma.vmem_to_hbm [thread:$0]  %s1143, 128, %s1140, %s1129
        $region80: #{tpu_custom_call.1} parent=55 // pred_fallthru
          _
      $region56: #{tpu_custom_call.1} parent=5 // pred_fallthru
        _
      %p1146 = scmp.le.s32.totalorder 2, %s23
      // Predicated region
      $region81: #{tpu_custom_call.1} parent=5 // pred_check
        %p1147 = pneg %p1146
      $region82: #{tpu_custom_call.1} parent=5 // pred_check_branch
        %1149 = sbr.rel (%p1147) target = $region84
      $region83: #{tpu_custom_call.1} parent=5 // pred_region
        %s1150 = ssub.s32 %s23, 2
        // Predicated region
        $region85: #{tpu_custom_call.1} parent=83 // pred_check
          %p1151 = pneg %p246
        $region86: #{tpu_custom_call.1} parent=83 // pred_check_branch
          %1153 = sbr.rel (%p1151) target = $region88
        $region87: #{tpu_custom_call.1} parent=83 // pred_region
          %s1154 = sand.u32 %s231, 1
          %s1155 = scalar_lea.sflag [#allocation4], %s1154
          %s1156 = sand.u32 %s231, 1
          %s1157 = smul.addr %s1156, 8
          %s1158 = scalar_lea.vmem [#allocation11], %s1157
          %1159 = dma.done %s1155, 128
        $region88: #{tpu_custom_call.1} parent=83 // pred_fallthru
          _
      $region84: #{tpu_custom_call.1} parent=5 // pred_fallthru
        _
    $region6: #{tpu_custom_call.1} parent=1 // loop_footer
      %s27 = sadd.s32 1, %s23
    $region7: #{tpu_custom_call.1} parent=1 // loop_footer_branch
      %22 = sbr.rel target = $region3
    $region8: #{tpu_custom_call.1} parent=1 // loop_exit
      _
    %1160 = vsyncpa [#allocation3], 1
    %s1161 = scalar_lea.sflag [#allocation3], 1
    %1162 = vsyncpa %s1161, 1
    %1163 = vsyncpa [#allocation6], 1
    %1164 = vsyncpa [#allocation9], 1
    %1165 = vsyncpa [#allocation4], 1
    %s1166 = scalar_lea.sflag [#allocation4], 1
    %1167 = vsyncpa %s1166, 1

</llo_original>
